<compile_context>
chip_gen: v7x
topology: tpu7x:2x2x1
jax: 0.10.0
libtpu: 0.0.40
codegen_flags: <defaults>
</compile_context>

<pallas_src>
import jax
import jax.numpy as jnp
from jax.experimental import pallas as pl
from jax.experimental.pallas import tpu as pltpu

NEG_SLOPE = 0.01  # nn.LeakyReLU default negative_slope


def _round_up(x, m):
    return (x + m - 1) // m * m


# ----------------------------- Pallas kernel ------------------------------ #
def conv_pool_kernel(p_ref, w_ref, b_ref, o_ref):
    """Fused conv-as-matmul + 2x2 max-pool + bias + LeakyReLU (transposed).

    p_ref : (4, K, TM)      im2col patches^T, one slab per 2x2 pool phase
                            (K = kh*kw*Cin on sublanes, TM positions on lanes)
    w_ref : (Cout_pad, K)   conv weight as matmul LHS (bf16, zero-padded rows)
    b_ref : (Cout_pad, 1)   conv bias (f32, zero-padded rows)
    o_ref : (Cout_pad, TM)  pooled, activated output tile (lane-dense, f32)
    """
    w = w_ref[...]

    def phase_dot(k):
        return jnp.dot(w, p_ref[k], preferred_element_type=jnp.float32)

    # MaxPool2d(2) over the raw conv outputs of the 4 phases, then bias +
    # LeakyReLU once:  max_i leaky(d_i + b) == leaky(max_i d_i + b).
    y = jnp.maximum(jnp.maximum(phase_dot(0), phase_dot(1)),
                    jnp.maximum(phase_dot(2), phase_dot(3)))
    y = y + b_ref[...]
    o_ref[...] = jnp.where(y > 0, y, NEG_SLOPE * y)


# ------------------------------ JAX glue ----------------------------------- #
def conv_pool_stage(x_cbhw, w_t, b, *, kh=5, kw=5, tile_m=512,
                    mxu_dtype=jnp.bfloat16):
    """One (conv -> LeakyReLU -> MaxPool2d(2)) stage.

    x_cbhw : (Cin, B, H, W) f32/bf16, already padded for the conv ("valid").
    w_t    : (Cout, kh*kw*Cin) f32, K ordered (kh, kw, cin).
    b      : (Cout,) f32
    Returns (Cout, B, Hp, Wp) f32  (same channel-major layout as the input).
    """
    C, B, H, W = x_cbhw.shape
    Ho, Wo = H - kh + 1, W - kw + 1          # valid conv output size
    Hp, Wp = Ho // 2, Wo // 2                # after 2x2 max pool (floor)
    K = kh * kw * C
    Cout = w_t.shape[0]
    Cp = _round_up(Cout, 8)                  # full-sublane output rows
    M = B * Hp * Wp                          # pooled output positions

    # --- im2col + pool-phase split (plain-XLA glue: slices / reshapes only).
    # Channel-major layout means no large transpose is ever needed: the
    # stacked patch tensor is already (K-major, M-minor).
    x = x_cbhw.astype(mxu_dtype)
    cols = [x[:, :, i:i + Ho, j:j + Wo]
            for i in range(kh) for j in range(kw)]
    pat = jnp.stack(cols, axis=0)            # (kh*kw, Cin, B, Ho, Wo)
    phases = [pat[..., dh:dh + 2 * Hp:2, dw:dw + 2 * Wp:2]
              for dh in (0, 1) for dw in (0, 1)]
    pt = jnp.stack(phases, axis=0).reshape(4, K, M)   # (4, K, M): M on lanes

    # Tile M (lane axis). TILE_M is a multiple of 128 -> lane-dense blocks.
    # Per-step VMEM (worst stage, TILE_M=512): 2 bufs x (4,150,512) bf16
    # patches + 2 x (16,512) f32 out + weights ~= 1.3 MiB -> fits everywhere.
    tm = min(tile_m, _round_up(M, 128))
    m_pad = _round_up(M, tm)
    pt = jnp.pad(pt, ((0, 0), (0, 0), (0, m_pad - M)))

    w_pad = jnp.pad(w_t, ((0, Cp - Cout), (0, 0))).astype(mxu_dtype)
    b_pad = jnp.pad(b, (0, Cp - Cout)).reshape(Cp, 1).astype(jnp.float32)

    out = pl.pallas_call(
        conv_pool_kernel,
        out_shape=jax.ShapeDtypeStruct((Cp, m_pad), jnp.float32),
        grid=(m_pad // tm,),
        in_specs=[
            pl.BlockSpec((4, K, tm), lambda m: (0, 0, m)),   # patch tile
            pl.BlockSpec((Cp, K), lambda m: (0, 0)),         # weights (resident)
            pl.BlockSpec((Cp, 1), lambda m: (0, 0)),         # bias (resident)
        ],
        out_specs=pl.BlockSpec((Cp, tm), lambda m: (0, m)),
        compiler_params=pltpu.CompilerParams(
            # Independent M tiles: lets the runtime shard over both v7x cores.
            dimension_semantics=("parallel",)),
    )(pt, w_pad, b_pad)

    return out[:Cout, :M].reshape(Cout, B, Hp, Wp)


def init_params(key):
    """Deterministic synthetic parameters (PyTorch conv weight layout)."""
    k1, k2, k3, k4 = jax.random.split(key, 4)
    w1 = jax.random.normal(k1, (6, 1, 5, 5), jnp.float32) * 0.1   # (Cout,Cin,kh,kw)
    b1 = jax.random.normal(k2, (6,), jnp.float32) * 0.1
    w2 = jax.random.normal(k3, (16, 6, 5, 5), jnp.float32) * 0.1
    b2 = jax.random.normal(k4, (16,), jnp.float32) * 0.1
    return {"w1": w1, "b1": b1, "w2": w2, "b2": b2}


def _to_matmul_weight(w):
    """(Cout, Cin, kh, kw) -> (Cout, kh*kw*Cin) matching im2col K ordering."""
    co, ci, kh, kw = w.shape
    return jnp.transpose(w, (0, 2, 3, 1)).reshape(co, kh * kw * ci)


@jax.jit
def cnn_encoder_forward(x_nchw, params):
    """Forward pass matching CNN_encoder. x: (B, 1, 28, 28) NCHW float32."""
    w1_t = _to_matmul_weight(params["w1"])
    w2_t = _to_matmul_weight(params["w2"])

    # Channel-major (C, B, H, W) activations end-to-end: stage-1 output feeds
    # stage-2 directly, no inter-stage layout change.
    x = jnp.transpose(x_nchw, (1, 0, 2, 3))                   # (1, B, 28, 28)
    x = jnp.pad(x, ((0, 0), (0, 0), (2, 2), (2, 2)))          # padding=2 (conv1)

    h1 = conv_pool_stage(x, w1_t, params["b1"])               # (6, B, 14, 14)
    h2 = conv_pool_stage(h1, w2_t, params["b2"])              # (16, B, 5, 5)

    # nn.Flatten on NCHW activations: channel-major -> (B, 16*5*5) = (B, 400)
    B = x_nchw.shape[0]
    return jnp.transpose(h2, (1, 0, 2, 3)).reshape(B, -1)


def reference_forward(x_nchw, params):
    """Pure-XLA reference using the same bf16 MXU operands / f32 epilogue."""
    def stage(x, w, b, pad):
        y = jax.lax.conv_general_dilated(
            x.astype(jnp.bfloat16), w.astype(jnp.bfloat16),
            window_strides=(1, 1), padding=[(pad, pad), (pad, pad)],
            dimension_numbers=("NCHW", "OIHW", "NCHW"),
            preferred_element_type=jnp.float32)
        y = y + b.reshape(1, -1, 1, 1)
        y = jnp.where(y > 0, y, NEG_SLOPE * y)
        return jax.lax.reduce_window(y, -jnp.inf, jax.lax.max,
                                     (1, 1, 2, 2), (1, 1, 2, 2), "VALID")
    h = stage(x_nchw, params["w1"], params["b1"], 2)
    h = stage(h, params["w2"], params["b2"], 0)
    return h.reshape(h.shape[0], -1)


if __name__ == "__main__":
    key = jax.random.PRNGKey(0)
    kx, kp = jax.random.split(key)
    x = jax.random.normal(kx, (2, 1, 28, 28), jnp.float32)
    params = init_params(kp)

    out = jax.block_until_ready(cnn_encoder_forward(x, params))
    assert out.shape == (2, 400), out.shape
    assert out.dtype == jnp.float32

    ref = jax.block_until_ready(reference_forward(x, params))
    err = float(jnp.max(jnp.abs(out - ref)))
    assert err < 1e-2, f"max abs error vs reference: {err}"

    print("KERNEL_OK")
</pallas_src>

<mosaic_0001>
module attributes {stable_mosaic.version = 11 : i64} {
  func.func @conv_pool_kernel(%arg0: i32, %arg1: memref<4x25x512xbf16, #tpu.memory_space<vmem>>, %arg2: memref<8x25xbf16, #tpu.memory_space<vmem>>, %arg3: memref<8x1xf32, #tpu.memory_space<vmem>>, %arg4: memref<8x512xf32, #tpu.memory_space<vmem>>) attributes {dimension_semantics = [#tpu.dimension_semantics<parallel>], iteration_bounds = array<i64: 1>, scalar_prefetch = 0 : i64, scratch_operands = 0 : i64, tpu.core_type = #tpu.core_type<tc>, window_params = [{transform_indices = @transform_0, window_bounds = array<i64: 4, 25, 512>}, {pipeline_mode = #tpu.pipeline_mode<synchronous>, transform_indices = @transform_1, window_bounds = array<i64: 8, 25>}, {pipeline_mode = #tpu.pipeline_mode<synchronous>, transform_indices = @transform_2, window_bounds = array<i64: 8, 1>}, {transform_indices = @transform_3, window_bounds = array<i64: 8, 512>}]} {
    %c0 = arith.constant 0 : index
    %c0_0 = arith.constant 0 : index
    %0 = vector.load %arg2[%c0, %c0_0] : memref<8x25xbf16, #tpu.memory_space<vmem>>, vector<8x25xbf16>
    %c0_1 = arith.constant 0 : index
    %c0_2 = arith.constant 0 : index
    %c0_3 = arith.constant 0 : index
    %1 = vector.load %arg1[%c0_1, %c0_2, %c0_3] : memref<4x25x512xbf16, #tpu.memory_space<vmem>>, vector<1x25x512xbf16>
    %2 = vector.shape_cast %1 : vector<1x25x512xbf16> to vector<25x512xbf16>
    %cst = arith.constant dense<0.000000e+00> : vector<8x512xf32>
    %3 = tpu.matmul %0, %2, %cst {dimension_numbers = #tpu.dot_dimension_numbers<[1], [0], [0], [1], [0, 0, 1, 1], [], []>} : vector<8x25xbf16>, vector<25x512xbf16>, vector<8x512xf32> -> vector<8x512xf32>
    %c1 = arith.constant 1 : index
    %c0_4 = arith.constant 0 : index
    %c0_5 = arith.constant 0 : index
    %4 = vector.load %arg1[%c1, %c0_4, %c0_5] : memref<4x25x512xbf16, #tpu.memory_space<vmem>>, vector<1x25x512xbf16>
    %5 = vector.shape_cast %4 : vector<1x25x512xbf16> to vector<25x512xbf16>
    %cst_6 = arith.constant dense<0.000000e+00> : vector<8x512xf32>
    %6 = tpu.matmul %0, %5, %cst_6 {dimension_numbers = #tpu.dot_dimension_numbers<[1], [0], [0], [1], [0, 0, 1, 1], [], []>} : vector<8x25xbf16>, vector<25x512xbf16>, vector<8x512xf32> -> vector<8x512xf32>
    %7 = arith.maximumf %3, %6 : vector<8x512xf32>
    %c2 = arith.constant 2 : index
    %c0_7 = arith.constant 0 : index
    %c0_8 = arith.constant 0 : index
    %8 = vector.load %arg1[%c2, %c0_7, %c0_8] : memref<4x25x512xbf16, #tpu.memory_space<vmem>>, vector<1x25x512xbf16>
    %9 = vector.shape_cast %8 : vector<1x25x512xbf16> to vector<25x512xbf16>
    %cst_9 = arith.constant dense<0.000000e+00> : vector<8x512xf32>
    %10 = tpu.matmul %0, %9, %cst_9 {dimension_numbers = #tpu.dot_dimension_numbers<[1], [0], [0], [1], [0, 0, 1, 1], [], []>} : vector<8x25xbf16>, vector<25x512xbf16>, vector<8x512xf32> -> vector<8x512xf32>
    %c3 = arith.constant 3 : index
    %c0_10 = arith.constant 0 : index
    %c0_11 = arith.constant 0 : index
    %11 = vector.load %arg1[%c3, %c0_10, %c0_11] : memref<4x25x512xbf16, #tpu.memory_space<vmem>>, vector<1x25x512xbf16>
    %12 = vector.shape_cast %11 : vector<1x25x512xbf16> to vector<25x512xbf16>
    %cst_12 = arith.constant dense<0.000000e+00> : vector<8x512xf32>
    %13 = tpu.matmul %0, %12, %cst_12 {dimension_numbers = #tpu.dot_dimension_numbers<[1], [0], [0], [1], [0, 0, 1, 1], [], []>} : vector<8x25xbf16>, vector<25x512xbf16>, vector<8x512xf32> -> vector<8x512xf32>
    %14 = arith.maximumf %10, %13 : vector<8x512xf32>
    %15 = arith.maximumf %7, %14 : vector<8x512xf32>
    %c0_13 = arith.constant 0 : index
    %c0_14 = arith.constant 0 : index
    %16 = vector.load %arg3[%c0_13, %c0_14] : memref<8x1xf32, #tpu.memory_space<vmem>>, vector<8x1xf32>
    %17 = vector.broadcast %16 : vector<8x1xf32> to vector<8x512xf32>
    %18 = arith.addf %15, %17 : vector<8x512xf32>
    %cst_15 = arith.constant 0.000000e+00 : f32
    %19 = vector.broadcast %cst_15 : f32 to vector<8x512xf32>
    %20 = arith.cmpf ogt, %18, %19 : vector<8x512xf32>
    %cst_16 = arith.constant 0.00999999977 : f32
    %21 = vector.broadcast %cst_16 : f32 to vector<8x512xf32>
    %22 = arith.mulf %21, %18 : vector<8x512xf32>
    %23 = arith.select %20, %18, %22 : vector<8x512xi1>, vector<8x512xf32>
    %c0_17 = arith.constant 0 : index
    %c0_18 = arith.constant 0 : index
    %24 = vector.load %arg4[%c0_17, %c0_18] : memref<8x512xf32, #tpu.memory_space<vmem>>, vector<8x512xf32>
    tpu.vector_store %arg4[%c0_17, %c0_18], %23 {strides = array<i32>} : memref<8x512xf32, #tpu.memory_space<vmem>>, vector<8x512xf32>,
    return
  }
  func.func @transform_0(%arg0: i32) -> (i32, i32, i32) {
    %c0_i32 = arith.constant 0 : i32
    %c0_i32_0 = arith.constant 0 : i32
    %c0_i32_1 = arith.constant 0 : i32
    return %c0_i32, %c0_i32_0, %arg0 : i32, i32, i32
  }
  func.func @transform_1(%arg0: i32) -> (i32, i32) {
    %c0_i32 = arith.constant 0 : i32
    %c0_i32_0 = arith.constant 0 : i32
    %c0_i32_1 = arith.constant 0 : i32
    return %c0_i32, %c0_i32_0 : i32, i32
  }
  func.func @transform_2(%arg0: i32) -> (i32, i32) {
    %c0_i32 = arith.constant 0 : i32
    %c0_i32_0 = arith.constant 0 : i32
    %c0_i32_1 = arith.constant 0 : i32
    return %c0_i32, %c0_i32_0 : i32, i32
  }
  func.func @transform_3(%arg0: i32) -> (i32, i32) {
    %c0_i32 = arith.constant 0 : i32
    %c0_i32_0 = arith.constant 0 : i32
    return %c0_i32, %arg0 : i32, i32
  }
}

module attributes {stable_mosaic.version = 11 : i64} {
  func.func @conv_pool_kernel(%arg0: i32, %arg1: memref<4x150x128xbf16, #tpu.memory_space<vmem>>, %arg2: memref<16x150xbf16, #tpu.memory_space<vmem>>, %arg3: memref<16x1xf32, #tpu.memory_space<vmem>>, %arg4: memref<16x128xf32, #tpu.memory_space<vmem>>) attributes {dimension_semantics = [#tpu.dimension_semantics<parallel>], iteration_bounds = array<i64: 1>, scalar_prefetch = 0 : i64, scratch_operands = 0 : i64, tpu.core_type = #tpu.core_type<tc>, window_params = [{transform_indices = @transform_0, window_bounds = array<i64: 4, 150, 128>}, {pipeline_mode = #tpu.pipeline_mode<synchronous>, transform_indices = @transform_1, window_bounds = array<i64: 16, 150>}, {pipeline_mode = #tpu.pipeline_mode<synchronous>, transform_indices = @transform_2, window_bounds = array<i64: 16, 1>}, {transform_indices = @transform_3, window_bounds = array<i64: 16, 128>}]} {
    %c0 = arith.constant 0 : index
    %c0_0 = arith.constant 0 : index
    %0 = vector.load %arg2[%c0, %c0_0] : memref<16x150xbf16, #tpu.memory_space<vmem>>, vector<16x150xbf16>
    %c0_1 = arith.constant 0 : index
    %c0_2 = arith.constant 0 : index
    %c0_3 = arith.constant 0 : index
    %1 = vector.load %arg1[%c0_1, %c0_2, %c0_3] : memref<4x150x128xbf16, #tpu.memory_space<vmem>>, vector<1x150x128xbf16>
    %2 = vector.shape_cast %1 : vector<1x150x128xbf16> to vector<150x128xbf16>
    %cst = arith.constant dense<0.000000e+00> : vector<16x128xf32>
    %3 = tpu.matmul %0, %2, %cst {dimension_numbers = #tpu.dot_dimension_numbers<[1], [0], [0], [1], [0, 0, 1, 1], [], []>} : vector<16x150xbf16>, vector<150x128xbf16>, vector<16x128xf32> -> vector<16x128xf32>
    %c1 = arith.constant 1 : index
    %c0_4 = arith.constant 0 : index
    %c0_5 = arith.constant 0 : index
    %4 = vector.load %arg1[%c1, %c0_4, %c0_5] : memref<4x150x128xbf16, #tpu.memory_space<vmem>>, vector<1x150x128xbf16>
    %5 = vector.shape_cast %4 : vector<1x150x128xbf16> to vector<150x128xbf16>
    %cst_6 = arith.constant dense<0.000000e+00> : vector<16x128xf32>
    %6 = tpu.matmul %0, %5, %cst_6 {dimension_numbers = #tpu.dot_dimension_numbers<[1], [0], [0], [1], [0, 0, 1, 1], [], []>} : vector<16x150xbf16>, vector<150x128xbf16>, vector<16x128xf32> -> vector<16x128xf32>
    %7 = arith.maximumf %3, %6 : vector<16x128xf32>
    %c2 = arith.constant 2 : index
    %c0_7 = arith.constant 0 : index
    %c0_8 = arith.constant 0 : index
    %8 = vector.load %arg1[%c2, %c0_7, %c0_8] : memref<4x150x128xbf16, #tpu.memory_space<vmem>>, vector<1x150x128xbf16>
    %9 = vector.shape_cast %8 : vector<1x150x128xbf16> to vector<150x128xbf16>
    %cst_9 = arith.constant dense<0.000000e+00> : vector<16x128xf32>
    %10 = tpu.matmul %0, %9, %cst_9 {dimension_numbers = #tpu.dot_dimension_numbers<[1], [0], [0], [1], [0, 0, 1, 1], [], []>} : vector<16x150xbf16>, vector<150x128xbf16>, vector<16x128xf32> -> vector<16x128xf32>
    %c3 = arith.constant 3 : index
    %c0_10 = arith.constant 0 : index
    %c0_11 = arith.constant 0 : index
    %11 = vector.load %arg1[%c3, %c0_10, %c0_11] : memref<4x150x128xbf16, #tpu.memory_space<vmem>>, vector<1x150x128xbf16>
    %12 = vector.shape_cast %11 : vector<1x150x128xbf16> to vector<150x128xbf16>
    %cst_12 = arith.constant dense<0.000000e+00> : vector<16x128xf32>
    %13 = tpu.matmul %0, %12, %cst_12 {dimension_numbers = #tpu.dot_dimension_numbers<[1], [0], [0], [1], [0, 0, 1, 1], [], []>} : vector<16x150xbf16>, vector<150x128xbf16>, vector<16x128xf32> -> vector<16x128xf32>
    %14 = arith.maximumf %10, %13 : vector<16x128xf32>
    %15 = arith.maximumf %7, %14 : vector<16x128xf32>
    %c0_13 = arith.constant 0 : index
    %c0_14 = arith.constant 0 : index
    %16 = vector.load %arg3[%c0_13, %c0_14] : memref<16x1xf32, #tpu.memory_space<vmem>>, vector<16x1xf32>
    %17 = vector.broadcast %16 : vector<16x1xf32> to vector<16x128xf32>
    %18 = arith.addf %15, %17 : vector<16x128xf32>
    %cst_15 = arith.constant 0.000000e+00 : f32
    %19 = vector.broadcast %cst_15 : f32 to vector<16x128xf32>
    %20 = arith.cmpf ogt, %18, %19 : vector<16x128xf32>
    %cst_16 = arith.constant 0.00999999977 : f32
    %21 = vector.broadcast %cst_16 : f32 to vector<16x128xf32>
    %22 = arith.mulf %21, %18 : vector<16x128xf32>
    %23 = arith.select %20, %18, %22 : vector<16x128xi1>, vector<16x128xf32>
    %c0_17 = arith.constant 0 : index
    %c0_18 = arith.constant 0 : index
    %24 = vector.load %arg4[%c0_17, %c0_18] : memref<16x128xf32, #tpu.memory_space<vmem>>, vector<16x128xf32>
    tpu.vector_store %arg4[%c0_17, %c0_18], %23 {strides = array<i32>} : memref<16x128xf32, #tpu.memory_space<vmem>>, vector<16x128xf32>,
    return
  }
  func.func @transform_0(%arg0: i32) -> (i32, i32, i32) {
    %c0_i32 = arith.constant 0 : i32
    %c0_i32_0 = arith.constant 0 : i32
    %c0_i32_1 = arith.constant 0 : i32
    return %c0_i32, %c0_i32_0, %arg0 : i32, i32, i32
  }
  func.func @transform_1(%arg0: i32) -> (i32, i32) {
    %c0_i32 = arith.constant 0 : i32
    %c0_i32_0 = arith.constant 0 : i32
    %c0_i32_1 = arith.constant 0 : i32
    return %c0_i32, %c0_i32_0 : i32, i32
  }
  func.func @transform_2(%arg0: i32) -> (i32, i32) {
    %c0_i32 = arith.constant 0 : i32
    %c0_i32_0 = arith.constant 0 : i32
    %c0_i32_1 = arith.constant 0 : i32
    return %c0_i32, %c0_i32_0 : i32, i32
  }
  func.func @transform_3(%arg0: i32) -> (i32, i32) {
    %c0_i32 = arith.constant 0 : i32
    %c0_i32_0 = arith.constant 0 : i32
    return %c0_i32, %arg0 : i32, i32
  }
}

</mosaic_0001>

<llo_original>
// kernel: cnn_encoder_forward.2
$region0: #{cnn_encoder_forward.2}
  #allocation0 [shape = 'u32[]', space=smem, size = 0x4, offset = 0x4, fixed_abs, tag = 'smem constant byte address 0x4 - core index']
  #allocation1 [shape = 'u32[144,128]{1,0:T(1,128)}', space=vmem, size = 0x12000, scoped, tag = 'internal scratch']
  %s0 = inlined_call_operand.vmem [shape: bf16[4,25,512], index: 0, kind: input, shape index: {}]
  %s1 = inlined_call_operand.vmem [shape: bf16[8,25], index: 1, kind: input, shape index: {}]
  %s2 = inlined_call_operand.vmem [shape: f32[8,1], index: 2, kind: input, shape index: {}]
  %s3 = inlined_call_operand.vmem [shape: f32[8,512], index: 3, kind: output, shape index: {}]
  %s4 = sld [smem:[#allocation0]]
  $region22: #{cnn_encoder_forward.2} parent=0
    _
  %s6 = ssub.s32 1, %s4
  %s7 = scalar_select 0, %s6, %s4
  // Predicated region
  $region2: #{cnn_encoder_forward.2} parent=0 // pred_check
    _
  $region3: #{cnn_encoder_forward.2} parent=0 // pred_check_branch
    %9 = sbr.rel (0) target = $region5
  $region4: #{cnn_encoder_forward.2} parent=0 // pred_region
    _
  $region5: #{cnn_encoder_forward.2} parent=0 // pred_fallthru
    _
  // Predicated region
  $region6: #{cnn_encoder_forward.2} parent=0 // pred_check
    _
  $region7: #{cnn_encoder_forward.2} parent=0 // pred_check_branch
    %11 = sbr.rel (0) target = $region9
  $region8: #{cnn_encoder_forward.2} parent=0 // pred_region
    _
  $region9: #{cnn_encoder_forward.2} parent=0 // pred_fallthru
    _
  // Predicated region
  $region10: #{cnn_encoder_forward.2} parent=0 // pred_check
    _
  $region11: #{cnn_encoder_forward.2} parent=0 // pred_check_branch
    %13 = sbr.rel (0) target = $region13
  $region12: #{cnn_encoder_forward.2} parent=0 // pred_region
    _
  $region13: #{cnn_encoder_forward.2} parent=0 // pred_fallthru
    _
  %v15 = vld [vmem:[%s1] sm:$0xf]
  %v16 = vld [vmem:[%s0] sm:$0xff]
  %v17 = vld [vmem:[%s0 + $0x8] sm:$0xff]
  %v18 = vld [vmem:[%s0 + $0x10] sm:$0xff]
  %v19 = vld [vmem:[%s0 + $0x18] sm:$0xff]
  %v20 = vld [vmem:[%s0 + $0x20] sm:$0xff]
  %v21 = vld [vmem:[%s0 + $0x28] sm:$0xff]
  %v22 = vld [vmem:[%s0 + $0x30] sm:$0x11]
  %v23 = vld [vmem:[%s0 + $0x38] sm:$0x11]
  %v32 = vunpack.c.l.b16 %v16
  %v33 = vunpack.c.h.b16 %v16
  %v34 = vunpack.c.l.b16 %v17
  %v35 = vunpack.c.h.b16 %v17
  %v36 = vunpack.c.l.b16 %v18
  %v37 = vunpack.c.h.b16 %v18
  %v38 = vunpack.c.l.b16 %v19
  %v39 = vunpack.c.h.b16 %v19
  %v40 = vunpack.c.l.b16 %v20
  %v41 = vunpack.c.h.b16 %v20
  %v42 = vunpack.c.l.b16 %v21
  %v43 = vunpack.c.h.b16 %v21
  %v44 = vunpack.c.l.b16 %v22
  %v45 = vunpack.c.h.b16 %v22
  %v46 = vunpack.c.l.b16 %v23
  %v47 = vunpack.c.h.b16 %v23
  %v48 = vpack.c.b16 %v36, %v32
  %v49 = vpack.c.b16 %v37, %v33
  %v50 = vpack.c.b16 %v38, %v34
  %v51 = vpack.c.b16 %v39, %v35
  %v52 = vpack.c.b16 %v44, %v40
  %v53 = vpack.c.b16 %v45, %v41
  %v54 = vpack.c.b16 %v46, %v42
  %v55 = vpack.c.b16 %v47, %v43
  %vm60 = vcmask 203776
  %v62 = vsel %vm60, %v15, 0
  %vm64 = vcmask 1043456
  %vm65 = vcmask 1044480
  %v66 = vsel %vm64, 4294967295, 65535
  %v67 = vsel %vm65, %v66, 0
  %v69 = vand.u32 %v52, %v67
  %v72 = vand.u32 %v53, %v67
  %v75 = vand.u32 %v54, %v67
  %v78 = vand.u32 %v55, %v67
  %80 = vmatprep.subr.bf16.mxu0 %v49
  %81 = vmatpush1.bf16.msra.mxu0 %v48
  %82 = vmatprep.subr.bf16.mxu0 %v72
  %83 = vmatpush1.bf16.msra.mxu0 %v69
  %84 = vmatprep.subr.bf16.mxu0 0
  %85 = vmatpush1.bf16.msra.mxu0 0
  %86 = vmatprep.subr.bf16.mxu0 0
  %87 = vmatpush1.bf16.msra.mxu0 0
  %88 = vmatprep.subr.bf16.mxu0 0
  %89 = vmatpush1.bf16.msra.mxu0 0
  %90 = vmatprep.subr.bf16.mxu0 0
  %91 = vmatpush1.bf16.msra.mxu0 0
  %92 = vmatprep.subr.bf16.mxu0 0
  %93 = vmatpush1.bf16.msra.mxu0 0
  %94 = vmatprep.subr.bf16.mxu0 0
  %95 = vmatpush1.bf16.msra.mxu0 0
  %96 = vmatprep.subr.bf16.mxu0 0
  %97 = vmatpush1.bf16.msra.mxu0 0
  %98 = vmatprep.subr.bf16.mxu0 0
  %99 = vmatpush1.bf16.msra.mxu0 0
  %100 = vmatprep.subr.bf16.mxu0 0
  %101 = vmatpush1.bf16.msra.mxu0 0
  %102 = vmatprep.subr.bf16.mxu0 0
  %103 = vmatpush1.bf16.msra.mxu0 0
  %104 = vmatprep.subr.bf16.mxu0 0
  %105 = vmatpush1.bf16.msra.mxu0 0
  %106 = vmatprep.subr.bf16.mxu0 0
  %107 = vmatpush1.bf16.msra.mxu0 0
  %108 = vmatprep.subr.bf16.mxu0 0
  %109 = vmatpush1.bf16.msra.mxu0 0
  %110 = vmatprep.subr.bf16.mxu0 0
  %111 = vmatpush1.bf16.msra.mxu0 0
  %112 = vmatprep.mubr.bf16.mxu0 0
  %113 = vmatmul.mubr.bf16.gmra.mrb[0].mxu0 %v62
  %v114 = vpop.f32.mrb[0].mxu0
  %v115 = vadd.f32 0.0, %v114
  %v116 = vpop.f32.mrb[0].mxu0
  %v117 = vadd.f32 0.0, %v116
  %v118 = vpop.f32.mrb[0].mxu0
  %v119 = vpop.f32.mrb[0].mxu0
  %120 = vdwg.mxu0
  %121 = vmatprep.subr.bf16.mxu0 %v51
  %122 = vmatpush1.bf16.msra.mxu0 %v50
  %123 = vmatprep.subr.bf16.mxu0 %v78
  %124 = vmatpush1.bf16.msra.mxu0 %v75
  %125 = vmatprep.subr.bf16.mxu0 0
  %126 = vmatpush1.bf16.msra.mxu0 0
  %127 = vmatprep.subr.bf16.mxu0 0
  %128 = vmatpush1.bf16.msra.mxu0 0
  %129 = vmatprep.subr.bf16.mxu0 0
  %130 = vmatpush1.bf16.msra.mxu0 0
  %131 = vmatprep.subr.bf16.mxu0 0
  %132 = vmatpush1.bf16.msra.mxu0 0
  %133 = vmatprep.subr.bf16.mxu0 0
  %134 = vmatpush1.bf16.msra.mxu0 0
  %135 = vmatprep.subr.bf16.mxu0 0
  %136 = vmatpush1.bf16.msra.mxu0 0
  %137 = vmatprep.subr.bf16.mxu0 0
  %138 = vmatpush1.bf16.msra.mxu0 0
  %139 = vmatprep.subr.bf16.mxu0 0
  %140 = vmatpush1.bf16.msra.mxu0 0
  %141 = vmatprep.subr.bf16.mxu0 0
  %142 = vmatpush1.bf16.msra.mxu0 0
  %143 = vmatprep.subr.bf16.mxu0 0
  %144 = vmatpush1.bf16.msra.mxu0 0
  %145 = vmatprep.subr.bf16.mxu0 0
  %146 = vmatpush1.bf16.msra.mxu0 0
  %147 = vmatprep.subr.bf16.mxu0 0
  %148 = vmatpush1.bf16.msra.mxu0 0
  %149 = vmatprep.subr.bf16.mxu0 0
  %150 = vmatpush1.bf16.msra.mxu0 0
  %151 = vmatprep.subr.bf16.mxu0 0
  %152 = vmatpush1.bf16.msra.mxu0 0
  %153 = vmatprep.mubr.bf16.mxu0 0
  %154 = vmatmul.mubr.bf16.gmra.mrb[0].mxu0 %v62
  %v155 = vpop.f32.mrb[0].mxu0
  %v156 = vadd.f32 0.0, %v155
  %v157 = vpop.f32.mrb[0].mxu0
  %v158 = vadd.f32 0.0, %v157
  %v159 = vpop.f32.mrb[0].mxu0
  %v160 = vpop.f32.mrb[0].mxu0
  %161 = vdwg.mxu0
  %s162 = scalar_lea.vmem %s0, 64
  %v163 = vld [vmem:[%s162] sm:$0xff]
  %v164 = vld [vmem:[%s162 + $0x8] sm:$0xff]
  %v165 = vld [vmem:[%s162 + $0x10] sm:$0xff]
  %v166 = vld [vmem:[%s162 + $0x18] sm:$0xff]
  %v167 = vld [vmem:[%s162 + $0x20] sm:$0xff]
  %v168 = vld [vmem:[%s162 + $0x28] sm:$0xff]
  %v169 = vld [vmem:[%s162 + $0x30] sm:$0x11]
  %v170 = vld [vmem:[%s162 + $0x38] sm:$0x11]
  %v179 = vunpack.c.l.b16 %v163
  %v180 = vunpack.c.h.b16 %v163
  %v181 = vunpack.c.l.b16 %v164
  %v182 = vunpack.c.h.b16 %v164
  %v183 = vunpack.c.l.b16 %v165
  %v184 = vunpack.c.h.b16 %v165
  %v185 = vunpack.c.l.b16 %v166
  %v186 = vunpack.c.h.b16 %v166
  %v187 = vunpack.c.l.b16 %v167
  %v188 = vunpack.c.h.b16 %v167
  %v189 = vunpack.c.l.b16 %v168
  %v190 = vunpack.c.h.b16 %v168
  %v191 = vunpack.c.l.b16 %v169
  %v192 = vunpack.c.h.b16 %v169
  %v193 = vunpack.c.l.b16 %v170
  %v194 = vunpack.c.h.b16 %v170
  %v195 = vpack.c.b16 %v183, %v179
  %v196 = vpack.c.b16 %v184, %v180
  %v197 = vpack.c.b16 %v185, %v181
  %v198 = vpack.c.b16 %v186, %v182
  %v199 = vpack.c.b16 %v191, %v187
  %v200 = vpack.c.b16 %v192, %v188
  %v201 = vpack.c.b16 %v193, %v189
  %v202 = vpack.c.b16 %v194, %v190
  %v208 = vand.u32 %v199, %v67
  %v211 = vand.u32 %v200, %v67
  %v214 = vand.u32 %v201, %v67
  %v217 = vand.u32 %v202, %v67
  %219 = vmatprep.subr.bf16.mxu0 %v196
  %220 = vmatpush1.bf16.msra.mxu0 %v195
  %221 = vmatprep.subr.bf16.mxu0 %v211
  %222 = vmatpush1.bf16.msra.mxu0 %v208
  %223 = vmatprep.subr.bf16.mxu0 0
  %224 = vmatpush1.bf16.msra.mxu0 0
  %225 = vmatprep.subr.bf16.mxu0 0
  %226 = vmatpush1.bf16.msra.mxu0 0
  %227 = vmatprep.subr.bf16.mxu0 0
  %228 = vmatpush1.bf16.msra.mxu0 0
  %229 = vmatprep.subr.bf16.mxu0 0
  %230 = vmatpush1.bf16.msra.mxu0 0
  %231 = vmatprep.subr.bf16.mxu0 0
  %232 = vmatpush1.bf16.msra.mxu0 0
  %233 = vmatprep.subr.bf16.mxu0 0
  %234 = vmatpush1.bf16.msra.mxu0 0
  %235 = vmatprep.subr.bf16.mxu0 0
  %236 = vmatpush1.bf16.msra.mxu0 0
  %237 = vmatprep.subr.bf16.mxu0 0
  %238 = vmatpush1.bf16.msra.mxu0 0
  %239 = vmatprep.subr.bf16.mxu0 0
  %240 = vmatpush1.bf16.msra.mxu0 0
  %241 = vmatprep.subr.bf16.mxu0 0
  %242 = vmatpush1.bf16.msra.mxu0 0
  %243 = vmatprep.subr.bf16.mxu0 0
  %244 = vmatpush1.bf16.msra.mxu0 0
  %245 = vmatprep.subr.bf16.mxu0 0
  %246 = vmatpush1.bf16.msra.mxu0 0
  %247 = vmatprep.subr.bf16.mxu0 0
  %248 = vmatpush1.bf16.msra.mxu0 0
  %249 = vmatprep.subr.bf16.mxu0 0
  %250 = vmatpush1.bf16.msra.mxu0 0
  %251 = vmatprep.mubr.bf16.mxu0 0
  %252 = vmatmul.mubr.bf16.gmra.mrb[0].mxu0 %v62
  %v253 = vpop.f32.mrb[0].mxu0
  %v254 = vadd.f32 0.0, %v253
  %v255 = vpop.f32.mrb[0].mxu0
  %v256 = vadd.f32 0.0, %v255
  %v257 = vpop.f32.mrb[0].mxu0
  %v258 = vpop.f32.mrb[0].mxu0
  %259 = vdwg.mxu0
  %260 = vmatprep.subr.bf16.mxu0 %v198
  %261 = vmatpush1.bf16.msra.mxu0 %v197
  %262 = vmatprep.subr.bf16.mxu0 %v217
  %263 = vmatpush1.bf16.msra.mxu0 %v214
  %264 = vmatprep.subr.bf16.mxu0 0
  %265 = vmatpush1.bf16.msra.mxu0 0
  %266 = vmatprep.subr.bf16.mxu0 0
  %267 = vmatpush1.bf16.msra.mxu0 0
  %268 = vmatprep.subr.bf16.mxu0 0
  %269 = vmatpush1.bf16.msra.mxu0 0
  %270 = vmatprep.subr.bf16.mxu0 0
  %271 = vmatpush1.bf16.msra.mxu0 0
  %272 = vmatprep.subr.bf16.mxu0 0
  %273 = vmatpush1.bf16.msra.mxu0 0
  %274 = vmatprep.subr.bf16.mxu0 0
  %275 = vmatpush1.bf16.msra.mxu0 0
  %276 = vmatprep.subr.bf16.mxu0 0
  %277 = vmatpush1.bf16.msra.mxu0 0
  %278 = vmatprep.subr.bf16.mxu0 0
  %279 = vmatpush1.bf16.msra.mxu0 0
  %280 = vmatprep.subr.bf16.mxu0 0
  %281 = vmatpush1.bf16.msra.mxu0 0
  %282 = vmatprep.subr.bf16.mxu0 0
  %283 = vmatpush1.bf16.msra.mxu0 0
  %284 = vmatprep.subr.bf16.mxu0 0
  %285 = vmatpush1.bf16.msra.mxu0 0
  %286 = vmatprep.subr.bf16.mxu0 0
  %287 = vmatpush1.bf16.msra.mxu0 0
  %288 = vmatprep.subr.bf16.mxu0 0
  %289 = vmatpush1.bf16.msra.mxu0 0
  %290 = vmatprep.subr.bf16.mxu0 0
  %291 = vmatpush1.bf16.msra.mxu0 0
  %292 = vmatprep.mubr.bf16.mxu0 0
  %293 = vmatmul.mubr.bf16.gmra.mrb[0].mxu0 %v62
  %v294 = vpop.f32.mrb[0].mxu0
  %v295 = vadd.f32 0.0, %v294
  %v296 = vpop.f32.mrb[0].mxu0
  %v297 = vadd.f32 0.0, %v296
  %v298 = vpop.f32.mrb[0].mxu0
  %v299 = vpop.f32.mrb[0].mxu0
  %300 = vdwg.mxu0
  %v301 = vmax.f32 %v115, %v254
  %v302 = vmax.f32 %v117, %v256
  %v303 = vmax.f32 %v156, %v295
  %v304 = vmax.f32 %v158, %v297
  %s305 = scalar_lea.vmem %s0, 128
  %v306 = vld [vmem:[%s305] sm:$0xff]
  %v307 = vld [vmem:[%s305 + $0x8] sm:$0xff]
  %v308 = vld [vmem:[%s305 + $0x10] sm:$0xff]
  %v309 = vld [vmem:[%s305 + $0x18] sm:$0xff]
  %v310 = vld [vmem:[%s305 + $0x20] sm:$0xff]
  %v311 = vld [vmem:[%s305 + $0x28] sm:$0xff]
  %v312 = vld [vmem:[%s305 + $0x30] sm:$0x11]
  %v313 = vld [vmem:[%s305 + $0x38] sm:$0x11]
  %v322 = vunpack.c.l.b16 %v306
  %v323 = vunpack.c.h.b16 %v306
  %v324 = vunpack.c.l.b16 %v307
  %v325 = vunpack.c.h.b16 %v307
  %v326 = vunpack.c.l.b16 %v308
  %v327 = vunpack.c.h.b16 %v308
  %v328 = vunpack.c.l.b16 %v309
  %v329 = vunpack.c.h.b16 %v309
  %v330 = vunpack.c.l.b16 %v310
  %v331 = vunpack.c.h.b16 %v310
  %v332 = vunpack.c.l.b16 %v311
  %v333 = vunpack.c.h.b16 %v311
  %v334 = vunpack.c.l.b16 %v312
  %v335 = vunpack.c.h.b16 %v312
  %v336 = vunpack.c.l.b16 %v313
  %v337 = vunpack.c.h.b16 %v313
  %v338 = vpack.c.b16 %v326, %v322
  %v339 = vpack.c.b16 %v327, %v323
  %v340 = vpack.c.b16 %v328, %v324
  %v341 = vpack.c.b16 %v329, %v325
  %v342 = vpack.c.b16 %v334, %v330
  %v343 = vpack.c.b16 %v335, %v331
  %v344 = vpack.c.b16 %v336, %v332
  %v345 = vpack.c.b16 %v337, %v333
  %v351 = vand.u32 %v342, %v67
  %v354 = vand.u32 %v343, %v67
  %v357 = vand.u32 %v344, %v67
  %v360 = vand.u32 %v345, %v67
  %362 = vmatprep.subr.bf16.mxu0 %v339
  %363 = vmatpush1.bf16.msra.mxu0 %v338
  %364 = vmatprep.subr.bf16.mxu0 %v354
  %365 = vmatpush1.bf16.msra.mxu0 %v351
  %366 = vmatprep.subr.bf16.mxu0 0
  %367 = vmatpush1.bf16.msra.mxu0 0
  %368 = vmatprep.subr.bf16.mxu0 0
  %369 = vmatpush1.bf16.msra.mxu0 0
  %370 = vmatprep.subr.bf16.mxu0 0
  %371 = vmatpush1.bf16.msra.mxu0 0
  %372 = vmatprep.subr.bf16.mxu0 0
  %373 = vmatpush1.bf16.msra.mxu0 0
  %374 = vmatprep.subr.bf16.mxu0 0
  %375 = vmatpush1.bf16.msra.mxu0 0
  %376 = vmatprep.subr.bf16.mxu0 0
  %377 = vmatpush1.bf16.msra.mxu0 0
  %378 = vmatprep.subr.bf16.mxu0 0
  %379 = vmatpush1.bf16.msra.mxu0 0
  %380 = vmatprep.subr.bf16.mxu0 0
  %381 = vmatpush1.bf16.msra.mxu0 0
  %382 = vmatprep.subr.bf16.mxu0 0
  %383 = vmatpush1.bf16.msra.mxu0 0
  %384 = vmatprep.subr.bf16.mxu0 0
  %385 = vmatpush1.bf16.msra.mxu0 0
  %386 = vmatprep.subr.bf16.mxu0 0
  %387 = vmatpush1.bf16.msra.mxu0 0
  %388 = vmatprep.subr.bf16.mxu0 0
  %389 = vmatpush1.bf16.msra.mxu0 0
  %390 = vmatprep.subr.bf16.mxu0 0
  %391 = vmatpush1.bf16.msra.mxu0 0
  %392 = vmatprep.subr.bf16.mxu0 0
  %393 = vmatpush1.bf16.msra.mxu0 0
  %394 = vmatprep.mubr.bf16.mxu0 0
  %395 = vmatmul.mubr.bf16.gmra.mrb[0].mxu0 %v62
  %v396 = vpop.f32.mrb[0].mxu0
  %v397 = vadd.f32 0.0, %v396
  %v398 = vpop.f32.mrb[0].mxu0
  %v399 = vadd.f32 0.0, %v398
  %v400 = vpop.f32.mrb[0].mxu0
  %v401 = vpop.f32.mrb[0].mxu0
  %402 = vdwg.mxu0
  %403 = vmatprep.subr.bf16.mxu0 %v341
  %404 = vmatpush1.bf16.msra.mxu0 %v340
  %405 = vmatprep.subr.bf16.mxu0 %v360
  %406 = vmatpush1.bf16.msra.mxu0 %v357
  %407 = vmatprep.subr.bf16.mxu0 0
  %408 = vmatpush1.bf16.msra.mxu0 0
  %409 = vmatprep.subr.bf16.mxu0 0
  %410 = vmatpush1.bf16.msra.mxu0 0
  %411 = vmatprep.subr.bf16.mxu0 0
  %412 = vmatpush1.bf16.msra.mxu0 0
  %413 = vmatprep.subr.bf16.mxu0 0
  %414 = vmatpush1.bf16.msra.mxu0 0
  %415 = vmatprep.subr.bf16.mxu0 0
  %416 = vmatpush1.bf16.msra.mxu0 0
  %417 = vmatprep.subr.bf16.mxu0 0
  %418 = vmatpush1.bf16.msra.mxu0 0
  %419 = vmatprep.subr.bf16.mxu0 0
  %420 = vmatpush1.bf16.msra.mxu0 0
  %421 = vmatprep.subr.bf16.mxu0 0
  %422 = vmatpush1.bf16.msra.mxu0 0
  %423 = vmatprep.subr.bf16.mxu0 0
  %424 = vmatpush1.bf16.msra.mxu0 0
  %425 = vmatprep.subr.bf16.mxu0 0
  %426 = vmatpush1.bf16.msra.mxu0 0
  %427 = vmatprep.subr.bf16.mxu0 0
  %428 = vmatpush1.bf16.msra.mxu0 0
  %429 = vmatprep.subr.bf16.mxu0 0
  %430 = vmatpush1.bf16.msra.mxu0 0
  %431 = vmatprep.subr.bf16.mxu0 0
  %432 = vmatpush1.bf16.msra.mxu0 0
  %433 = vmatprep.subr.bf16.mxu0 0
  %434 = vmatpush1.bf16.msra.mxu0 0
  %435 = vmatprep.mubr.bf16.mxu0 0
  %436 = vmatmul.mubr.bf16.gmra.mrb[0].mxu0 %v62
  %v437 = vpop.f32.mrb[0].mxu0
  %v438 = vadd.f32 0.0, %v437
  %v439 = vpop.f32.mrb[0].mxu0
  %v440 = vadd.f32 0.0, %v439
  %v441 = vpop.f32.mrb[0].mxu0
  %v442 = vpop.f32.mrb[0].mxu0
  %443 = vdwg.mxu0
  %s444 = scalar_lea.vmem %s0, 192
  %v445 = vld [vmem:[%s444] sm:$0xff]
  %v446 = vld [vmem:[%s444 + $0x8] sm:$0xff]
  %v447 = vld [vmem:[%s444 + $0x10] sm:$0xff]
  %v448 = vld [vmem:[%s444 + $0x18] sm:$0xff]
  %v449 = vld [vmem:[%s444 + $0x20] sm:$0xff]
  %v450 = vld [vmem:[%s444 + $0x28] sm:$0xff]
  %v451 = vld [vmem:[%s444 + $0x30] sm:$0x11]
  %v452 = vld [vmem:[%s444 + $0x38] sm:$0x11]
  %v461 = vunpack.c.l.b16 %v445
  %v462 = vunpack.c.h.b16 %v445
  %v463 = vunpack.c.l.b16 %v446
  %v464 = vunpack.c.h.b16 %v446
  %v465 = vunpack.c.l.b16 %v447
  %v466 = vunpack.c.h.b16 %v447
  %v467 = vunpack.c.l.b16 %v448
  %v468 = vunpack.c.h.b16 %v448
  %v469 = vunpack.c.l.b16 %v449
  %v470 = vunpack.c.h.b16 %v449
  %v471 = vunpack.c.l.b16 %v450
  %v472 = vunpack.c.h.b16 %v450
  %v473 = vunpack.c.l.b16 %v451
  %v474 = vunpack.c.h.b16 %v451
  %v475 = vunpack.c.l.b16 %v452
  %v476 = vunpack.c.h.b16 %v452
  %v477 = vpack.c.b16 %v465, %v461
  %v478 = vpack.c.b16 %v466, %v462
  %v479 = vpack.c.b16 %v467, %v463
  %v480 = vpack.c.b16 %v468, %v464
  %v481 = vpack.c.b16 %v473, %v469
  %v482 = vpack.c.b16 %v474, %v470
  %v483 = vpack.c.b16 %v475, %v471
  %v484 = vpack.c.b16 %v476, %v472
  %v490 = vand.u32 %v481, %v67
  %v493 = vand.u32 %v482, %v67
  %v496 = vand.u32 %v483, %v67
  %v499 = vand.u32 %v484, %v67
  %501 = vmatprep.subr.bf16.mxu0 %v478
  %502 = vmatpush1.bf16.msra.mxu0 %v477
  %503 = vmatprep.subr.bf16.mxu0 %v493
  %504 = vmatpush1.bf16.msra.mxu0 %v490
  %505 = vmatprep.subr.bf16.mxu0 0
  %506 = vmatpush1.bf16.msra.mxu0 0
  %507 = vmatprep.subr.bf16.mxu0 0
  %508 = vmatpush1.bf16.msra.mxu0 0
  %509 = vmatprep.subr.bf16.mxu0 0
  %510 = vmatpush1.bf16.msra.mxu0 0
  %511 = vmatprep.subr.bf16.mxu0 0
  %512 = vmatpush1.bf16.msra.mxu0 0
  %513 = vmatprep.subr.bf16.mxu0 0
  %514 = vmatpush1.bf16.msra.mxu0 0
  %515 = vmatprep.subr.bf16.mxu0 0
  %516 = vmatpush1.bf16.msra.mxu0 0
  %517 = vmatprep.subr.bf16.mxu0 0
  %518 = vmatpush1.bf16.msra.mxu0 0
  %519 = vmatprep.subr.bf16.mxu0 0
  %520 = vmatpush1.bf16.msra.mxu0 0
  %521 = vmatprep.subr.bf16.mxu0 0
  %522 = vmatpush1.bf16.msra.mxu0 0
  %523 = vmatprep.subr.bf16.mxu0 0
  %524 = vmatpush1.bf16.msra.mxu0 0
  %525 = vmatprep.subr.bf16.mxu0 0
  %526 = vmatpush1.bf16.msra.mxu0 0
  %527 = vmatprep.subr.bf16.mxu0 0
  %528 = vmatpush1.bf16.msra.mxu0 0
  %529 = vmatprep.subr.bf16.mxu0 0
  %530 = vmatpush1.bf16.msra.mxu0 0
  %531 = vmatprep.subr.bf16.mxu0 0
  %532 = vmatpush1.bf16.msra.mxu0 0
  %533 = vmatprep.mubr.bf16.mxu0 0
  %534 = vmatmul.mubr.bf16.gmra.mrb[0].mxu0 %v62
  %v535 = vpop.f32.mrb[0].mxu0
  %v536 = vadd.f32 0.0, %v535
  %v537 = vpop.f32.mrb[0].mxu0
  %v538 = vadd.f32 0.0, %v537
  %v539 = vpop.f32.mrb[0].mxu0
  %v540 = vpop.f32.mrb[0].mxu0
  %541 = vdwg.mxu0
  %542 = vmatprep.subr.bf16.mxu0 %v480
  %543 = vmatpush1.bf16.msra.mxu0 %v479
  %544 = vmatprep.subr.bf16.mxu0 %v499
  %545 = vmatpush1.bf16.msra.mxu0 %v496
  %546 = vmatprep.subr.bf16.mxu0 0
  %547 = vmatpush1.bf16.msra.mxu0 0
  %548 = vmatprep.subr.bf16.mxu0 0
  %549 = vmatpush1.bf16.msra.mxu0 0
  %550 = vmatprep.subr.bf16.mxu0 0
  %551 = vmatpush1.bf16.msra.mxu0 0
  %552 = vmatprep.subr.bf16.mxu0 0
  %553 = vmatpush1.bf16.msra.mxu0 0
  %554 = vmatprep.subr.bf16.mxu0 0
  %555 = vmatpush1.bf16.msra.mxu0 0
  %556 = vmatprep.subr.bf16.mxu0 0
  %557 = vmatpush1.bf16.msra.mxu0 0
  %558 = vmatprep.subr.bf16.mxu0 0
  %559 = vmatpush1.bf16.msra.mxu0 0
  %560 = vmatprep.subr.bf16.mxu0 0
  %561 = vmatpush1.bf16.msra.mxu0 0
  %562 = vmatprep.subr.bf16.mxu0 0
  %563 = vmatpush1.bf16.msra.mxu0 0
  %564 = vmatprep.subr.bf16.mxu0 0
  %565 = vmatpush1.bf16.msra.mxu0 0
  %566 = vmatprep.subr.bf16.mxu0 0
  %567 = vmatpush1.bf16.msra.mxu0 0
  %568 = vmatprep.subr.bf16.mxu0 0
  %569 = vmatpush1.bf16.msra.mxu0 0
  %570 = vmatprep.subr.bf16.mxu0 0
  %571 = vmatpush1.bf16.msra.mxu0 0
  %572 = vmatprep.subr.bf16.mxu0 0
  %573 = vmatpush1.bf16.msra.mxu0 0
  %574 = vmatprep.mubr.bf16.mxu0 0
  %575 = vmatmul.mubr.bf16.gmra.mrb[0].mxu0 %v62
  %v576 = vpop.f32.mrb[0].mxu0
  %v577 = vadd.f32 0.0, %v576
  %v578 = vpop.f32.mrb[0].mxu0
  %v579 = vadd.f32 0.0, %v578
  %v580 = vpop.f32.mrb[0].mxu0
  %v581 = vpop.f32.mrb[0].mxu0
  %582 = vdwg.mxu0
  %v583 = vmax.f32 %v397, %v536
  %v584 = vmax.f32 %v399, %v538
  %v585 = vmax.f32 %v438, %v577
  %v586 = vmax.f32 %v440, %v579
  %v587 = vmax.f32 %v301, %v583
  %v588 = vmax.f32 %v302, %v584
  %v589 = vmax.f32 %v303, %v585
  %v590 = vmax.f32 %v304, %v586
  %v591 = vld [vmem:[%s2] sm:$0xff]
  %593 = vset.pattern.permute.xlu0 0
  %594 = vperm.xlu0 %593, %v591
  %v595 = vpop.permute.xlu0 %594
  %v597 = vadd.f32 %v587, %v595
  %v598 = vadd.f32 %v588, %v595
  %v599 = vadd.f32 %v589, %v595
  %v600 = vadd.f32 %v590, %v595
  %vm601 = vcmp.gt.f32.partialorder %v597, 0.0
  %vm602 = vcmp.gt.f32.partialorder %v598, 0.0
  %vm603 = vcmp.gt.f32.partialorder %v599, 0.0
  %vm604 = vcmp.gt.f32.partialorder %v600, 0.0
  %v605 = vmul.f32 %v597, 0.01
  %v606 = vmul.f32 %v598, 0.01
  %v607 = vmul.f32 %v599, 0.01
  %v608 = vmul.f32 %v600, 0.01
  %v609 = vsel %vm601, %v597, %v605
  %v610 = vsel %vm602, %v598, %v606
  %v611 = vsel %vm603, %v599, %v607
  %v612 = vsel %vm604, %v600, %v608
  %613 = vst [vmem:[%s3] sm:$0xff] %v609
  %614 = vst [vmem:[%s3 + $0x8] sm:$0xff] %v610
  %615 = vst [vmem:[%s3 + $0x10] sm:$0xff] %v611
  %616 = vst [vmem:[%s3 + $0x18] sm:$0xff] %v612
  // Predicated region
  $region14: #{cnn_encoder_forward.2} parent=0 // pred_check
    _
  $region15: #{cnn_encoder_forward.2} parent=0 // pred_check_branch
    %618 = sbr.rel (0) target = $region17
  $region16: #{cnn_encoder_forward.2} parent=0 // pred_region
    _
  $region17: #{cnn_encoder_forward.2} parent=0 // pred_fallthru
    _
  // Predicated region
  $region18: #{cnn_encoder_forward.2} parent=0 // pred_check
    _
  $region19: #{cnn_encoder_forward.2} parent=0 // pred_check_branch
    %620 = sbr.rel (0) target = $region21
  $region20: #{cnn_encoder_forward.2} parent=0 // pred_region
    _
  $region21: #{cnn_encoder_forward.2} parent=0 // pred_fallthru
    _

// kernel: cnn_encoder_forward.3
$region0: #{cnn_encoder_forward.3}
  #allocation0 [shape = 'u32[]', space=smem, size = 0x4, offset = 0x4, fixed_abs, tag = 'smem constant byte address 0x4 - core index']
  #allocation1 [shape = 'u32[144,128]{1,0:T(1,128)}', space=vmem, size = 0x12000, scoped, tag = 'internal scratch']
  %s0 = inlined_call_operand.vmem [shape: bf16[4,150,128], index: 0, kind: input, shape index: {}]
  %s1 = inlined_call_operand.vmem [shape: bf16[16,150], index: 1, kind: input, shape index: {}]
  %s2 = inlined_call_operand.vmem [shape: f32[16,1], index: 2, kind: input, shape index: {}]
  %s3 = inlined_call_operand.vmem [shape: f32[16,128], index: 3, kind: output, shape index: {}]
  %s4 = sld [smem:[#allocation0]]
  $region22: #{cnn_encoder_forward.3} parent=0
    _
  %s6 = ssub.s32 1, %s4
  %s7 = scalar_select 0, %s6, %s4
  // Predicated region
  $region2: #{cnn_encoder_forward.3} parent=0 // pred_check
    _
  $region3: #{cnn_encoder_forward.3} parent=0 // pred_check_branch
    %9 = sbr.rel (0) target = $region5
  $region4: #{cnn_encoder_forward.3} parent=0 // pred_region
    _
  $region5: #{cnn_encoder_forward.3} parent=0 // pred_fallthru
    _
  // Predicated region
  $region6: #{cnn_encoder_forward.3} parent=0 // pred_check
    _
  $region7: #{cnn_encoder_forward.3} parent=0 // pred_check_branch
    %11 = sbr.rel (0) target = $region9
  $region8: #{cnn_encoder_forward.3} parent=0 // pred_region
    _
  $region9: #{cnn_encoder_forward.3} parent=0 // pred_fallthru
    _
  // Predicated region
  $region10: #{cnn_encoder_forward.3} parent=0 // pred_check
    _
  $region11: #{cnn_encoder_forward.3} parent=0 // pred_check_branch
    %13 = sbr.rel (0) target = $region13
  $region12: #{cnn_encoder_forward.3} parent=0 // pred_region
    _
  $region13: #{cnn_encoder_forward.3} parent=0 // pred_fallthru
    _
  %v15 = vld [vmem:[%s1] sm:$0xff]
  %v16 = vld [vmem:[%s1 + $0x8] sm:$0xff]
  %v17 = vld [vmem:[%s0] sm:$0xf]
  %v18 = vld [vmem:[%s0 + $0x4] sm:$0xf]
  %v19 = vld [vmem:[%s0 + $0x8] sm:$0xf]
  %v20 = vld [vmem:[%s0 + $0xc] sm:$0xf]
  %v21 = vld [vmem:[%s0 + $0x10] sm:$0xf]
  %v22 = vld [vmem:[%s0 + $0x14] sm:$0xf]
  %v23 = vld [vmem:[%s0 + $0x18] sm:$0xf]
  %v24 = vld [vmem:[%s0 + $0x1c] sm:$0xf]
  %v25 = vld [vmem:[%s0 + $0x20] sm:$0xf]
  %v26 = vld [vmem:[%s0 + $0x24] sm:$0xf]
  %v27 = vld [vmem:[%s0 + $0x28] sm:$0xf]
  %v28 = vld [vmem:[%s0 + $0x2c] sm:$0xf]
  %v29 = vld [vmem:[%s0 + $0x30] sm:$0xf]
  %v30 = vld [vmem:[%s0 + $0x34] sm:$0xf]
  %v31 = vld [vmem:[%s0 + $0x38] sm:$0xf]
  %v32 = vld [vmem:[%s0 + $0x3c] sm:$0xf]
  %v33 = vld [vmem:[%s0 + $0x40] sm:$0xf]
  %v34 = vld [vmem:[%s0 + $0x44] sm:$0xf]
  %v35 = vld [vmem:[%s0 + $0x48] sm:$0x7]
  %v38 = vunpack.c.l.b16 %v15
  %v39 = vunpack.c.h.b16 %v15
  %v40 = vunpack.c.l.b16 %v16
  %v41 = vunpack.c.h.b16 %v16
  %v42 = vpack.c.b16 %v40, %v38
  %v43 = vpack.c.b16 %v41, %v39
  %v64 = vunpack.c.l.b16 %v17
  %v65 = vunpack.c.l.b16 %v18
  %v66 = vunpack.c.l.b16 %v19
  %v67 = vunpack.c.l.b16 %v20
  %v68 = vunpack.c.l.b16 %v21
  %v69 = vunpack.c.l.b16 %v22
  %v70 = vunpack.c.l.b16 %v23
  %v71 = vunpack.c.l.b16 %v24
  %v72 = vunpack.c.l.b16 %v25
  %v73 = vunpack.c.l.b16 %v26
  %v74 = vunpack.c.l.b16 %v27
  %v75 = vunpack.c.l.b16 %v28
  %v76 = vunpack.c.l.b16 %v29
  %v77 = vunpack.c.l.b16 %v30
  %v78 = vunpack.c.l.b16 %v31
  %v79 = vunpack.c.l.b16 %v32
  %v80 = vunpack.c.l.b16 %v33
  %v81 = vunpack.c.l.b16 %v34
  %v82 = vunpack.c.l.b16 %v35
  %v83 = vpack.c.b16 %v65, %v64
  %v84 = vpack.c.b16 %v67, %v66
  %v85 = vpack.c.b16 %v69, %v68
  %v86 = vpack.c.b16 %v71, %v70
  %v87 = vpack.c.b16 %v73, %v72
  %v88 = vpack.c.b16 %v75, %v74
  %v89 = vpack.c.b16 %v77, %v76
  %v90 = vpack.c.b16 %v79, %v78
  %v91 = vpack.c.b16 %v81, %v80
  %v92 = vpack.c.b16 %v82, %v82
  %vm102 = vcmask 179200
  %v104 = vsel %vm102, %v43, 0
  %vm106 = vcmask 1042432
  %v108 = vsel %vm106, %v92, 0
  %110 = vmatprep.subr.bf16.mxu0 0
  %111 = vmatpush1.bf16.msra.mxu0 %v83
  %112 = vmatprep.subr.bf16.mxu0 0
  %113 = vmatpush1.bf16.msra.mxu0 %v84
  %114 = vmatprep.subr.bf16.mxu0 0
  %115 = vmatpush1.bf16.msra.mxu0 %v85
  %116 = vmatprep.subr.bf16.mxu0 0
  %117 = vmatpush1.bf16.msra.mxu0 %v86
  %118 = vmatprep.subr.bf16.mxu0 0
  %119 = vmatpush1.bf16.msra.mxu0 %v87
  %120 = vmatprep.subr.bf16.mxu0 0
  %121 = vmatpush1.bf16.msra.mxu0 %v88
  %122 = vmatprep.subr.bf16.mxu0 0
  %123 = vmatpush1.bf16.msra.mxu0 %v89
  %124 = vmatprep.subr.bf16.mxu0 0
  %125 = vmatpush1.bf16.msra.mxu0 %v90
  %126 = vmatprep.subr.bf16.mxu0 0
  %127 = vmatpush1.bf16.msra.mxu0 %v91
  %128 = vmatprep.subr.bf16.mxu0 0
  %129 = vmatpush1.bf16.msra.mxu0 %v108
  %130 = vmatprep.subr.bf16.mxu0 0
  %131 = vmatpush1.bf16.msra.mxu0 0
  %132 = vmatprep.subr.bf16.mxu0 0
  %133 = vmatpush1.bf16.msra.mxu0 0
  %134 = vmatprep.subr.bf16.mxu0 0
  %135 = vmatpush1.bf16.msra.mxu0 0
  %136 = vmatprep.subr.bf16.mxu0 0
  %137 = vmatpush1.bf16.msra.mxu0 0
  %138 = vmatprep.subr.bf16.mxu0 0
  %139 = vmatpush1.bf16.msra.mxu0 0
  %140 = vmatprep.subr.bf16.mxu0 0
  %141 = vmatpush1.bf16.msra.mxu0 0
  %142 = vmatprep.mubr.bf16.mxu0 %v104
  %143 = vmatmul.mubr.bf16.gmra.mrb[0].mxu0 %v42
  %v144 = vpop.f32.mrb[0].mxu0
  %v145 = vadd.f32 0.0, %v144
  %v146 = vpop.f32.mrb[0].mxu0
  %v147 = vpop.f32.mrb[0].mxu0
  %v148 = vadd.f32 0.0, %v147
  %v149 = vpop.f32.mrb[0].mxu0
  %150 = vdwg.mxu0
  %s151 = scalar_lea.vmem %s0, 76
  %v152 = vld [vmem:[%s151] sm:$0xf]
  %v153 = vld [vmem:[%s151 + $0x4] sm:$0xf]
  %v154 = vld [vmem:[%s151 + $0x8] sm:$0xf]
  %v155 = vld [vmem:[%s151 + $0xc] sm:$0xf]
  %v156 = vld [vmem:[%s151 + $0x10] sm:$0xf]
  %v157 = vld [vmem:[%s151 + $0x14] sm:$0xf]
  %v158 = vld [vmem:[%s151 + $0x18] sm:$0xf]
  %v159 = vld [vmem:[%s151 + $0x1c] sm:$0xf]
  %v160 = vld [vmem:[%s151 + $0x20] sm:$0xf]
  %v161 = vld [vmem:[%s151 + $0x24] sm:$0xf]
  %v162 = vld [vmem:[%s151 + $0x28] sm:$0xf]
  %v163 = vld [vmem:[%s151 + $0x2c] sm:$0xf]
  %v164 = vld [vmem:[%s151 + $0x30] sm:$0xf]
  %v165 = vld [vmem:[%s151 + $0x34] sm:$0xf]
  %v166 = vld [vmem:[%s151 + $0x38] sm:$0xf]
  %v167 = vld [vmem:[%s151 + $0x3c] sm:$0xf]
  %v168 = vld [vmem:[%s151 + $0x40] sm:$0xf]
  %v169 = vld [vmem:[%s151 + $0x44] sm:$0xf]
  %v170 = vld [vmem:[%s151 + $0x48] sm:$0x7]
  %v190 = vunpack.c.l.b16 %v152
  %v191 = vunpack.c.l.b16 %v153
  %v192 = vunpack.c.l.b16 %v154
  %v193 = vunpack.c.l.b16 %v155
  %v194 = vunpack.c.l.b16 %v156
  %v195 = vunpack.c.l.b16 %v157
  %v196 = vunpack.c.l.b16 %v158
  %v197 = vunpack.c.l.b16 %v159
  %v198 = vunpack.c.l.b16 %v160
  %v199 = vunpack.c.l.b16 %v161
  %v200 = vunpack.c.l.b16 %v162
  %v201 = vunpack.c.l.b16 %v163
  %v202 = vunpack.c.l.b16 %v164
  %v203 = vunpack.c.l.b16 %v165
  %v204 = vunpack.c.l.b16 %v166
  %v205 = vunpack.c.l.b16 %v167
  %v206 = vunpack.c.l.b16 %v168
  %v207 = vunpack.c.l.b16 %v169
  %v208 = vunpack.c.l.b16 %v170
  %v209 = vpack.c.b16 %v191, %v190
  %v210 = vpack.c.b16 %v193, %v192
  %v211 = vpack.c.b16 %v195, %v194
  %v212 = vpack.c.b16 %v197, %v196
  %v213 = vpack.c.b16 %v199, %v198
  %v214 = vpack.c.b16 %v201, %v200
  %v215 = vpack.c.b16 %v203, %v202
  %v216 = vpack.c.b16 %v205, %v204
  %v217 = vpack.c.b16 %v207, %v206
  %v218 = vpack.c.b16 %v208, %v208
  %v229 = vsel %vm106, %v218, 0
  %231 = vmatprep.subr.bf16.mxu0 0
  %232 = vmatpush1.bf16.msra.mxu0 %v209
  %233 = vmatprep.subr.bf16.mxu0 0
  %234 = vmatpush1.bf16.msra.mxu0 %v210
  %235 = vmatprep.subr.bf16.mxu0 0
  %236 = vmatpush1.bf16.msra.mxu0 %v211
  %237 = vmatprep.subr.bf16.mxu0 0
  %238 = vmatpush1.bf16.msra.mxu0 %v212
  %239 = vmatprep.subr.bf16.mxu0 0
  %240 = vmatpush1.bf16.msra.mxu0 %v213
  %241 = vmatprep.subr.bf16.mxu0 0
  %242 = vmatpush1.bf16.msra.mxu0 %v214
  %243 = vmatprep.subr.bf16.mxu0 0
  %244 = vmatpush1.bf16.msra.mxu0 %v215
  %245 = vmatprep.subr.bf16.mxu0 0
  %246 = vmatpush1.bf16.msra.mxu0 %v216
  %247 = vmatprep.subr.bf16.mxu0 0
  %248 = vmatpush1.bf16.msra.mxu0 %v217
  %249 = vmatprep.subr.bf16.mxu0 0
  %250 = vmatpush1.bf16.msra.mxu0 %v229
  %251 = vmatprep.subr.bf16.mxu0 0
  %252 = vmatpush1.bf16.msra.mxu0 0
  %253 = vmatprep.subr.bf16.mxu0 0
  %254 = vmatpush1.bf16.msra.mxu0 0
  %255 = vmatprep.subr.bf16.mxu0 0
  %256 = vmatpush1.bf16.msra.mxu0 0
  %257 = vmatprep.subr.bf16.mxu0 0
  %258 = vmatpush1.bf16.msra.mxu0 0
  %259 = vmatprep.subr.bf16.mxu0 0
  %260 = vmatpush1.bf16.msra.mxu0 0
  %261 = vmatprep.subr.bf16.mxu0 0
  %262 = vmatpush1.bf16.msra.mxu0 0
  %263 = vmatprep.mubr.bf16.mxu0 %v104
  %264 = vmatmul.mubr.bf16.gmra.mrb[0].mxu0 %v42
  %v265 = vpop.f32.mrb[0].mxu0
  %v266 = vadd.f32 0.0, %v265
  %v267 = vpop.f32.mrb[0].mxu0
  %v268 = vpop.f32.mrb[0].mxu0
  %v269 = vadd.f32 0.0, %v268
  %v270 = vpop.f32.mrb[0].mxu0
  %271 = vdwg.mxu0
  %v272 = vmax.f32 %v145, %v266
  %v273 = vmax.f32 %v148, %v269
  %s274 = scalar_lea.vmem %s0, 152
  %v275 = vld [vmem:[%s274] sm:$0xf]
  %v276 = vld [vmem:[%s274 + $0x4] sm:$0xf]
  %v277 = vld [vmem:[%s274 + $0x8] sm:$0xf]
  %v278 = vld [vmem:[%s274 + $0xc] sm:$0xf]
  %v279 = vld [vmem:[%s274 + $0x10] sm:$0xf]
  %v280 = vld [vmem:[%s274 + $0x14] sm:$0xf]
  %v281 = vld [vmem:[%s274 + $0x18] sm:$0xf]
  %v282 = vld [vmem:[%s274 + $0x1c] sm:$0xf]
  %v283 = vld [vmem:[%s274 + $0x20] sm:$0xf]
  %v284 = vld [vmem:[%s274 + $0x24] sm:$0xf]
  %v285 = vld [vmem:[%s274 + $0x28] sm:$0xf]
  %v286 = vld [vmem:[%s274 + $0x2c] sm:$0xf]
  %v287 = vld [vmem:[%s274 + $0x30] sm:$0xf]
  %v288 = vld [vmem:[%s274 + $0x34] sm:$0xf]
  %v289 = vld [vmem:[%s274 + $0x38] sm:$0xf]
  %v290 = vld [vmem:[%s274 + $0x3c] sm:$0xf]
  %v291 = vld [vmem:[%s274 + $0x40] sm:$0xf]
  %v292 = vld [vmem:[%s274 + $0x44] sm:$0xf]
  %v293 = vld [vmem:[%s274 + $0x48] sm:$0x7]
  %v313 = vunpack.c.l.b16 %v275
  %v314 = vunpack.c.l.b16 %v276
  %v315 = vunpack.c.l.b16 %v277
  %v316 = vunpack.c.l.b16 %v278
  %v317 = vunpack.c.l.b16 %v279
  %v318 = vunpack.c.l.b16 %v280
  %v319 = vunpack.c.l.b16 %v281
  %v320 = vunpack.c.l.b16 %v282
  %v321 = vunpack.c.l.b16 %v283
  %v322 = vunpack.c.l.b16 %v284
  %v323 = vunpack.c.l.b16 %v285
  %v324 = vunpack.c.l.b16 %v286
  %v325 = vunpack.c.l.b16 %v287
  %v326 = vunpack.c.l.b16 %v288
  %v327 = vunpack.c.l.b16 %v289
  %v328 = vunpack.c.l.b16 %v290
  %v329 = vunpack.c.l.b16 %v291
  %v330 = vunpack.c.l.b16 %v292
  %v331 = vunpack.c.l.b16 %v293
  %v332 = vpack.c.b16 %v314, %v313
  %v333 = vpack.c.b16 %v316, %v315
  %v334 = vpack.c.b16 %v318, %v317
  %v335 = vpack.c.b16 %v320, %v319
  %v336 = vpack.c.b16 %v322, %v321
  %v337 = vpack.c.b16 %v324, %v323
  %v338 = vpack.c.b16 %v326, %v325
  %v339 = vpack.c.b16 %v328, %v327
  %v340 = vpack.c.b16 %v330, %v329
  %v341 = vpack.c.b16 %v331, %v331
  %v352 = vsel %vm106, %v341, 0
  %354 = vmatprep.subr.bf16.mxu0 0
  %355 = vmatpush1.bf16.msra.mxu0 %v332
  %356 = vmatprep.subr.bf16.mxu0 0
  %357 = vmatpush1.bf16.msra.mxu0 %v333
  %358 = vmatprep.subr.bf16.mxu0 0
  %359 = vmatpush1.bf16.msra.mxu0 %v334
  %360 = vmatprep.subr.bf16.mxu0 0
  %361 = vmatpush1.bf16.msra.mxu0 %v335
  %362 = vmatprep.subr.bf16.mxu0 0
  %363 = vmatpush1.bf16.msra.mxu0 %v336
  %364 = vmatprep.subr.bf16.mxu0 0
  %365 = vmatpush1.bf16.msra.mxu0 %v337
  %366 = vmatprep.subr.bf16.mxu0 0
  %367 = vmatpush1.bf16.msra.mxu0 %v338
  %368 = vmatprep.subr.bf16.mxu0 0
  %369 = vmatpush1.bf16.msra.mxu0 %v339
  %370 = vmatprep.subr.bf16.mxu0 0
  %371 = vmatpush1.bf16.msra.mxu0 %v340
  %372 = vmatprep.subr.bf16.mxu0 0
  %373 = vmatpush1.bf16.msra.mxu0 %v352
  %374 = vmatprep.subr.bf16.mxu0 0
  %375 = vmatpush1.bf16.msra.mxu0 0
  %376 = vmatprep.subr.bf16.mxu0 0
  %377 = vmatpush1.bf16.msra.mxu0 0
  %378 = vmatprep.subr.bf16.mxu0 0
  %379 = vmatpush1.bf16.msra.mxu0 0
  %380 = vmatprep.subr.bf16.mxu0 0
  %381 = vmatpush1.bf16.msra.mxu0 0
  %382 = vmatprep.subr.bf16.mxu0 0
  %383 = vmatpush1.bf16.msra.mxu0 0
  %384 = vmatprep.subr.bf16.mxu0 0
  %385 = vmatpush1.bf16.msra.mxu0 0
  %386 = vmatprep.mubr.bf16.mxu0 %v104
  %387 = vmatmul.mubr.bf16.gmra.mrb[0].mxu0 %v42
  %v388 = vpop.f32.mrb[0].mxu0
  %v389 = vadd.f32 0.0, %v388
  %v390 = vpop.f32.mrb[0].mxu0
  %v391 = vpop.f32.mrb[0].mxu0
  %v392 = vadd.f32 0.0, %v391
  %v393 = vpop.f32.mrb[0].mxu0
  %394 = vdwg.mxu0
  %s395 = scalar_lea.vmem %s0, 228
  %v396 = vld [vmem:[%s395] sm:$0xf]
  %v397 = vld [vmem:[%s395 + $0x4] sm:$0xf]
  %v398 = vld [vmem:[%s395 + $0x8] sm:$0xf]
  %v399 = vld [vmem:[%s395 + $0xc] sm:$0xf]
  %v400 = vld [vmem:[%s395 + $0x10] sm:$0xf]
  %v401 = vld [vmem:[%s395 + $0x14] sm:$0xf]
  %v402 = vld [vmem:[%s395 + $0x18] sm:$0xf]
  %v403 = vld [vmem:[%s395 + $0x1c] sm:$0xf]
  %v404 = vld [vmem:[%s395 + $0x20] sm:$0xf]
  %v405 = vld [vmem:[%s395 + $0x24] sm:$0xf]
  %v406 = vld [vmem:[%s395 + $0x28] sm:$0xf]
  %v407 = vld [vmem:[%s395 + $0x2c] sm:$0xf]
  %v408 = vld [vmem:[%s395 + $0x30] sm:$0xf]
  %v409 = vld [vmem:[%s395 + $0x34] sm:$0xf]
  %v410 = vld [vmem:[%s395 + $0x38] sm:$0xf]
  %v411 = vld [vmem:[%s395 + $0x3c] sm:$0xf]
  %v412 = vld [vmem:[%s395 + $0x40] sm:$0xf]
  %v413 = vld [vmem:[%s395 + $0x44] sm:$0xf]
  %v414 = vld [vmem:[%s395 + $0x48] sm:$0x7]
  %v434 = vunpack.c.l.b16 %v396
  %v435 = vunpack.c.l.b16 %v397
  %v436 = vunpack.c.l.b16 %v398
  %v437 = vunpack.c.l.b16 %v399
  %v438 = vunpack.c.l.b16 %v400
  %v439 = vunpack.c.l.b16 %v401
  %v440 = vunpack.c.l.b16 %v402
  %v441 = vunpack.c.l.b16 %v403
  %v442 = vunpack.c.l.b16 %v404
  %v443 = vunpack.c.l.b16 %v405
  %v444 = vunpack.c.l.b16 %v406
  %v445 = vunpack.c.l.b16 %v407
  %v446 = vunpack.c.l.b16 %v408
  %v447 = vunpack.c.l.b16 %v409
  %v448 = vunpack.c.l.b16 %v410
  %v449 = vunpack.c.l.b16 %v411
  %v450 = vunpack.c.l.b16 %v412
  %v451 = vunpack.c.l.b16 %v413
  %v452 = vunpack.c.l.b16 %v414
  %v453 = vpack.c.b16 %v435, %v434
  %v454 = vpack.c.b16 %v437, %v436
  %v455 = vpack.c.b16 %v439, %v438
  %v456 = vpack.c.b16 %v441, %v440
  %v457 = vpack.c.b16 %v443, %v442
  %v458 = vpack.c.b16 %v445, %v444
  %v459 = vpack.c.b16 %v447, %v446
  %v460 = vpack.c.b16 %v449, %v448
  %v461 = vpack.c.b16 %v451, %v450
  %v462 = vpack.c.b16 %v452, %v452
  %v473 = vsel %vm106, %v462, 0
  %475 = vmatprep.subr.bf16.mxu0 0
  %476 = vmatpush1.bf16.msra.mxu0 %v453
  %477 = vmatprep.subr.bf16.mxu0 0
  %478 = vmatpush1.bf16.msra.mxu0 %v454
  %479 = vmatprep.subr.bf16.mxu0 0
  %480 = vmatpush1.bf16.msra.mxu0 %v455
  %481 = vmatprep.subr.bf16.mxu0 0
  %482 = vmatpush1.bf16.msra.mxu0 %v456
  %483 = vmatprep.subr.bf16.mxu0 0
  %484 = vmatpush1.bf16.msra.mxu0 %v457
  %485 = vmatprep.subr.bf16.mxu0 0
  %486 = vmatpush1.bf16.msra.mxu0 %v458
  %487 = vmatprep.subr.bf16.mxu0 0
  %488 = vmatpush1.bf16.msra.mxu0 %v459
  %489 = vmatprep.subr.bf16.mxu0 0
  %490 = vmatpush1.bf16.msra.mxu0 %v460
  %491 = vmatprep.subr.bf16.mxu0 0
  %492 = vmatpush1.bf16.msra.mxu0 %v461
  %493 = vmatprep.subr.bf16.mxu0 0
  %494 = vmatpush1.bf16.msra.mxu0 %v473
  %495 = vmatprep.subr.bf16.mxu0 0
  %496 = vmatpush1.bf16.msra.mxu0 0
  %497 = vmatprep.subr.bf16.mxu0 0
  %498 = vmatpush1.bf16.msra.mxu0 0
  %499 = vmatprep.subr.bf16.mxu0 0
  %500 = vmatpush1.bf16.msra.mxu0 0
  %501 = vmatprep.subr.bf16.mxu0 0
  %502 = vmatpush1.bf16.msra.mxu0 0
  %503 = vmatprep.subr.bf16.mxu0 0
  %504 = vmatpush1.bf16.msra.mxu0 0
  %505 = vmatprep.subr.bf16.mxu0 0
  %506 = vmatpush1.bf16.msra.mxu0 0
  %507 = vmatprep.mubr.bf16.mxu0 %v104
  %508 = vmatmul.mubr.bf16.gmra.mrb[0].mxu0 %v42
  %v509 = vpop.f32.mrb[0].mxu0
  %v510 = vadd.f32 0.0, %v509
  %v511 = vpop.f32.mrb[0].mxu0
  %v512 = vpop.f32.mrb[0].mxu0
  %v513 = vadd.f32 0.0, %v512
  %v514 = vpop.f32.mrb[0].mxu0
  %515 = vdwg.mxu0
  %v516 = vmax.f32 %v389, %v510
  %v517 = vmax.f32 %v392, %v513
  %v518 = vmax.f32 %v272, %v516
  %v519 = vmax.f32 %v273, %v517
  %v520 = vld [vmem:[%s2] sm:$0xff]
  %v521 = vld [vmem:[%s2 + $0x8] sm:$0xff]
  %523 = vset.pattern.permute.xlu0 0
  %524 = vperm.xlu0 %523, %v520
  %v525 = vpop.permute.xlu0 %524
  %528 = vset.pattern.permute.xlu0 0
  %529 = vperm.xlu0 %528, %v521
  %v530 = vpop.permute.xlu0 %529
  %v532 = vadd.f32 %v518, %v525
  %v533 = vadd.f32 %v519, %v530
  %vm534 = vcmp.gt.f32.partialorder %v532, 0.0
  %vm535 = vcmp.gt.f32.partialorder %v533, 0.0
  %v536 = vmul.f32 %v532, 0.01
  %v537 = vmul.f32 %v533, 0.01
  %v538 = vsel %vm534, %v532, %v536
  %v539 = vsel %vm535, %v533, %v537
  %540 = vst [vmem:[%s3] sm:$0xff] %v538
  %541 = vst [vmem:[%s3 + $0x8] sm:$0xff] %v539
  // Predicated region
  $region14: #{cnn_encoder_forward.3} parent=0 // pred_check
    _
  $region15: #{cnn_encoder_forward.3} parent=0 // pred_check_branch
    %543 = sbr.rel (0) target = $region17
  $region16: #{cnn_encoder_forward.3} parent=0 // pred_region
    _
  $region17: #{cnn_encoder_forward.3} parent=0 // pred_fallthru
    _
  // Predicated region
  $region18: #{cnn_encoder_forward.3} parent=0 // pred_check
    _
  $region19: #{cnn_encoder_forward.3} parent=0 // pred_check_branch
    %545 = sbr.rel (0) target = $region21
  $region20: #{cnn_encoder_forward.3} parent=0 // pred_region
    _
  $region21: #{cnn_encoder_forward.3} parent=0 // pred_fallthru
    _

</llo_original>
